<compile_context>
chip_gen: v6e
topology: v6e:2x2x1
jax: 0.10.0
libtpu: 0.0.40
codegen_flags: <defaults>
</compile_context>

<pallas_src>
import functools

import jax
import jax.numpy as jnp
from jax.experimental import pallas as pl
from jax.experimental.pallas import tpu as pltpu


def _se_cat_kernel(x_ref, cat_ref, w1x_t_ref, w1c_t_ref, w2_t_ref, o_ref, *,
                   inv_hw, batch_block):
    # x_ref:    (BB, C, HW)   native dtype, BB batch images per grid step
    # cat_ref:  (B, CAT)      VMEM-resident (constant index_map)
    # w1x_t:    (C, HIDp)     = pad(W1)[:, :C].T   (resident)
    # w1c_t:    (CAT, HIDp)   = pad(W1)[:, C:].T   (resident)
    # w2_t:     (HIDp, C)     = pad(W2).T          (resident)
    # o_ref:    (BB, C, HW)   same dtype as x

    # ---- Global average pool over the spatial (lane) axis, f32 accumulation.
    pooled = jnp.sum(x_ref[...].astype(jnp.float32), axis=-1) * inv_hw        # (BB, C)

    # ---- Squeeze/excite MLP (f32).  The torch concat is fused into two matmuls.
    start = pl.multiple_of(pl.program_id(0) * batch_block, batch_block)
    cat_blk = cat_ref[pl.ds(start, batch_block), :].astype(jnp.float32)       # (BB, CAT)
    z = jnp.dot(pooled, w1x_t_ref[...].astype(jnp.float32),
                preferred_element_type=jnp.float32)
    z = z + jnp.dot(cat_blk, w1c_t_ref[...].astype(jnp.float32),
                    preferred_element_type=jnp.float32)
    z = jnp.maximum(z, 0.0)                                                   # ReLU
    s = jax.nn.sigmoid(jnp.dot(z, w2_t_ref[...].astype(jnp.float32),
                               preferred_element_type=jnp.float32))           # (BB, C)

    # ---- Channel-wise rescale.  x is re-read from VMEM (cheap) rather than
    # kept live across the MLP; store casts back to the input dtype.
    o_ref[...] = (x_ref[...].astype(jnp.float32) * s[:, :, None]).astype(o_ref.dtype)


def prepare_se_cat_params(w1, w2, channel):
    """Hoisted weight preprocessing -- call ONCE at parameter-prep time.

    w1: (HID, C+CAT) fc1 weight (torch layout), w2: (C, HID) fc2 weight.
    Splits W1 into x / cat parts, transposes, and zero-pads the tiny hidden dim
    up to a 128-lane granule (a mathematical no-op: padded hidden units are 0
    after ReLU and multiply zero rows of W2)."""
    hid = w1.shape[0]
    assert w2.shape == (channel, hid)
    hid_pad = ((hid + 127) // 128) * 128
    w1_p = jnp.pad(w1.astype(jnp.float32), ((0, hid_pad - hid), (0, 0)))
    w2_p = jnp.pad(w2.astype(jnp.float32), ((0, 0), (0, hid_pad - hid)))
    w1x_t = jnp.transpose(w1_p[:, :channel])     # (C,   HIDp)
    w1c_t = jnp.transpose(w1_p[:, channel:])     # (CAT, HIDp)
    w2_t = jnp.transpose(w2_p)                   # (HIDp, C)
    return w1x_t, w1c_t, w2_t


def _pick_batch_block(batch, c, hw, itemsize, budget_bytes=12 * 1024 * 1024):
    """Largest divisor of `batch` whose in+out double-buffered tiles fit a
    conservative VMEM budget (safe under every chip's default scoped limit)."""
    per_img = max(1, c * hw * itemsize)
    max_bb = max(1, budget_bytes // (4 * per_img))   # x tile + out tile, 2 bufs each
    bb = 1
    for d in range(1, batch + 1):
        if batch % d == 0 and d <= max_bb:
            bb = d
    return bb


def se_cat_layer(x_nchw, cat_feature, w1x_t, w1c_t, w2_t):
    """x_nchw: (B, C, H, W) in its native dtype (f32 or bf16);
    cat_feature: (B, CAT); w1x_t/w1c_t/w2_t from prepare_se_cat_params."""
    b, c, h, w = x_nchw.shape
    cat_ch = cat_feature.shape[1]
    hidp = w1x_t.shape[1]
    hw = h * w

    x_flat = x_nchw.reshape(b, c, hw)            # contiguous reshape: free
    itemsize = jnp.dtype(x_nchw.dtype).itemsize
    bb = _pick_batch_block(b, c, hw, itemsize)

    kernel = functools.partial(_se_cat_kernel, inv_hw=1.0 / float(hw),
                               batch_block=bb)

    out = pl.pallas_call(
        kernel,
        out_shape=jax.ShapeDtypeStruct((b, c, hw), x_nchw.dtype),
        grid=(b // bb,),
        in_specs=[
            pl.BlockSpec((bb, c, hw), lambda i: (i, 0, 0)),    # x: bb images / step
            pl.BlockSpec((b, cat_ch), lambda i: (0, 0)),       # resident
            pl.BlockSpec((c, hidp), lambda i: (0, 0)),         # resident
            pl.BlockSpec((cat_ch, hidp), lambda i: (0, 0)),    # resident
            pl.BlockSpec((hidp, c), lambda i: (0, 0)),         # resident
        ],
        out_specs=pl.BlockSpec((bb, c, hw), lambda i: (i, 0, 0)),
        input_output_aliases={0: 0},                           # in-place rescale
        compiler_params=pltpu.CompilerParams(
            dimension_semantics=("parallel",)),                # megacore on v7x
    )(x_flat, cat_feature, w1x_t, w1c_t, w2_t)

    return out.reshape(b, c, h, w)


def _reference(x, cat_feature, w1, w2):
    pooled = jnp.mean(x, axis=(2, 3))                       # (B, C)
    y = jnp.concatenate([pooled, cat_feature], axis=1)      # (B, C+CAT)
    y = jnp.maximum(y @ w1.T, 0.0)                          # (B, HID)
    y = jax.nn.sigmoid(y @ w2.T)                            # (B, C)
    return x * y[:, :, None, None]


if __name__ == "__main__":
    # Small shapes consistent with the module: channel=64, reduction=16 -> hidden=4
    B, C, H, W = 2, 64, 8, 8
    CAT = 16
    REDUCTION = 16
    HID = C // REDUCTION

    key = jax.random.PRNGKey(0)
    kx, kc, k1, k2 = jax.random.split(key, 4)

    x = jax.random.normal(kx, (B, C, H, W), dtype=jnp.float32)
    cat_feature = jax.random.normal(kc, (B, CAT), dtype=jnp.float32)
    # Deterministic parameter init (Kaiming-ish scaling, bias-free Linears).
    w1 = jax.random.normal(k1, (HID, C + CAT), dtype=jnp.float32) * (1.0 / jnp.sqrt(C + CAT))
    w2 = jax.random.normal(k2, (C, HID), dtype=jnp.float32) * (1.0 / jnp.sqrt(HID))

    # One-time parameter prep (hoisted out of the forward path).
    w1x_t, w1c_t, w2_t = prepare_se_cat_params(w1, w2, C)

    fwd = jax.jit(se_cat_layer)

    # float32 path (tight tolerance vs. pure-JAX reference).
    out = jax.block_until_ready(fwd(x, cat_feature, w1x_t, w1c_t, w2_t))
    ref = _reference(x, cat_feature, w1, w2)
    assert out.shape == (B, C, H, W)
    assert jnp.allclose(out, ref, atol=1e-5, rtol=1e-5), "f32 mismatch vs reference"

    # Native-dtype (bf16) I/O path: x moved as bf16, SE math stays f32 in-kernel.
    x_bf16 = x.astype(jnp.bfloat16)
    out_bf16 = jax.block_until_ready(fwd(x_bf16, cat_feature, w1x_t, w1c_t, w2_t))
    assert out_bf16.dtype == jnp.bfloat16
    ref_bf16 = _reference(x_bf16.astype(jnp.float32), cat_feature, w1, w2)
    assert jnp.allclose(out_bf16.astype(jnp.float32), ref_bf16, atol=5e-2, rtol=5e-2), \
        "bf16 mismatch vs reference"

    print("KERNEL_OK")
</pallas_src>

<mosaic_0001>
module attributes {stable_mosaic.version = 11 : i64} {
  func.func @_se_cat_kernel(%arg0: i32, %arg1: memref<2x64x64xf32, #tpu.memory_space<vmem>>, %arg2: memref<2x16xf32, #tpu.memory_space<vmem>>, %arg3: memref<64x128xf32, #tpu.memory_space<vmem>>, %arg4: memref<16x128xf32, #tpu.memory_space<vmem>>, %arg5: memref<128x64xf32, #tpu.memory_space<vmem>>, %arg6: memref<2x64x64xf32, #tpu.memory_space<vmem>>) attributes {dimension_semantics = [#tpu.dimension_semantics<parallel>], iteration_bounds = array<i64: 1>, scalar_prefetch = 0 : i64, scratch_operands = 0 : i64, tpu.core_type = #tpu.core_type<tc>, window_params = [{transform_indices = @transform_0, window_bounds = array<i64: 2, 64, 64>}, {pipeline_mode = #tpu.pipeline_mode<synchronous>, transform_indices = @transform_1, window_bounds = array<i64: 2, 16>}, {pipeline_mode = #tpu.pipeline_mode<synchronous>, transform_indices = @transform_2, window_bounds = array<i64: 64, 128>}, {pipeline_mode = #tpu.pipeline_mode<synchronous>, transform_indices = @transform_3, window_bounds = array<i64: 16, 128>}, {pipeline_mode = #tpu.pipeline_mode<synchronous>, transform_indices = @transform_4, window_bounds = array<i64: 128, 64>}, {transform_indices = @transform_5, window_bounds = array<i64: 2, 64, 64>}]} {
    %c0 = arith.constant 0 : index
    %c0_0 = arith.constant 0 : index
    %c0_1 = arith.constant 0 : index
    %0 = vector.load %arg1[%c0, %c0_0, %c0_1] : memref<2x64x64xf32, #tpu.memory_space<vmem>>, vector<2x64x64xf32>
    %cst = arith.constant dense<0.000000e+00> : vector<2x64xf32>
    %1 = vector.multi_reduction <add>, %0, %cst [2] : vector<2x64x64xf32> to vector<2x64xf32>
    %cst_2 = arith.constant 1.562500e-02 : f32
    %2 = vector.broadcast %cst_2 : f32 to vector<2x64xf32>
    %3 = arith.mulf %1, %2 : vector<2x64xf32>
    %c2_i32 = arith.constant 2 : i32
    %4 = arith.muli %arg0, %c2_i32 : i32
    %5 = tpu.assume_multiple %4, 2 : i32
    %6 = arith.index_cast %5 : i32 to index
    %c0_3 = arith.constant 0 : index
    %7 = vector.load %arg2[%6, %c0_3] : memref<2x16xf32, #tpu.memory_space<vmem>>, vector<2x16xf32>
    %c0_4 = arith.constant 0 : index
    %c0_5 = arith.constant 0 : index
    %8 = vector.load %arg3[%c0_4, %c0_5] : memref<64x128xf32, #tpu.memory_space<vmem>>, vector<64x128xf32>
    %cst_6 = arith.constant dense<0.000000e+00> : vector<2x128xf32>
    %9 = tpu.matmul %3, %8, %cst_6 {dimension_numbers = #tpu.dot_dimension_numbers<[1], [0], [0], [1], [0, 0, 1, 1], [], []>} : vector<2x64xf32>, vector<64x128xf32>, vector<2x128xf32> -> vector<2x128xf32>
    %c0_7 = arith.constant 0 : index
    %c0_8 = arith.constant 0 : index
    %10 = vector.load %arg4[%c0_7, %c0_8] : memref<16x128xf32, #tpu.memory_space<vmem>>, vector<16x128xf32>
    %cst_9 = arith.constant dense<0.000000e+00> : vector<2x128xf32>
    %11 = tpu.matmul %7, %10, %cst_9 {dimension_numbers = #tpu.dot_dimension_numbers<[1], [0], [0], [1], [0, 0, 1, 1], [], []>} : vector<2x16xf32>, vector<16x128xf32>, vector<2x128xf32> -> vector<2x128xf32>
    %12 = arith.addf %9, %11 : vector<2x128xf32>
    %cst_10 = arith.constant 0.000000e+00 : f32
    %13 = vector.broadcast %cst_10 : f32 to vector<2x128xf32>
    %14 = arith.maximumf %12, %13 : vector<2x128xf32>
    %c0_11 = arith.constant 0 : index
    %c0_12 = arith.constant 0 : index
    %15 = vector.load %arg5[%c0_11, %c0_12] : memref<128x64xf32, #tpu.memory_space<vmem>>, vector<128x64xf32>
    %cst_13 = arith.constant dense<0.000000e+00> : vector<2x64xf32>
    %16 = tpu.matmul %14, %15, %cst_13 {dimension_numbers = #tpu.dot_dimension_numbers<[1], [0], [0], [1], [0, 0, 1, 1], [], []>} : vector<2x128xf32>, vector<128x64xf32>, vector<2x64xf32> -> vector<2x64xf32>
    %17 = arith.negf %16 : vector<2x64xf32>
    %18 = math.exp %17 : vector<2x64xf32>
    %cst_14 = arith.constant 1.000000e+00 : f32
    %19 = vector.broadcast %cst_14 : f32 to vector<2x64xf32>
    %20 = arith.addf %19, %18 : vector<2x64xf32>
    %21 = arith.divf %19, %20 : vector<2x64xf32>
    %c0_15 = arith.constant 0 : index
    %c0_16 = arith.constant 0 : index
    %c0_17 = arith.constant 0 : index
    %22 = vector.load %arg1[%c0_15, %c0_16, %c0_17] : memref<2x64x64xf32, #tpu.memory_space<vmem>>, vector<2x64x64xf32>
    %23 = vector.shape_cast %21 : vector<2x64xf32> to vector<2x64x1xf32>
    %24 = vector.broadcast %23 : vector<2x64x1xf32> to vector<2x64x64xf32>
    %25 = arith.mulf %22, %24 : vector<2x64x64xf32>
    %c0_18 = arith.constant 0 : index
    %c0_19 = arith.constant 0 : index
    %c0_20 = arith.constant 0 : index
    %26 = vector.load %arg6[%c0_18, %c0_19, %c0_20] : memref<2x64x64xf32, #tpu.memory_space<vmem>>, vector<2x64x64xf32>
    tpu.vector_store %arg6[%c0_18, %c0_19, %c0_20], %25 {strides = array<i32>} : memref<2x64x64xf32, #tpu.memory_space<vmem>>, vector<2x64x64xf32>,
    return
  }
  func.func @transform_0(%arg0: i32) -> (i32, i32, i32) {
    %c0_i32 = arith.constant 0 : i32
    %c0_i32_0 = arith.constant 0 : i32
    %c0_i32_1 = arith.constant 0 : i32
    return %arg0, %c0_i32, %c0_i32_0 : i32, i32, i32
  }
  func.func @transform_1(%arg0: i32) -> (i32, i32) {
    %c0_i32 = arith.constant 0 : i32
    %c0_i32_0 = arith.constant 0 : i32
    %c0_i32_1 = arith.constant 0 : i32
    return %c0_i32, %c0_i32_0 : i32, i32
  }
  func.func @transform_2(%arg0: i32) -> (i32, i32) {
    %c0_i32 = arith.constant 0 : i32
    %c0_i32_0 = arith.constant 0 : i32
    %c0_i32_1 = arith.constant 0 : i32
    return %c0_i32, %c0_i32_0 : i32, i32
  }
  func.func @transform_3(%arg0: i32) -> (i32, i32) {
    %c0_i32 = arith.constant 0 : i32
    %c0_i32_0 = arith.constant 0 : i32
    %c0_i32_1 = arith.constant 0 : i32
    return %c0_i32, %c0_i32_0 : i32, i32
  }
  func.func @transform_4(%arg0: i32) -> (i32, i32) {
    %c0_i32 = arith.constant 0 : i32
    %c0_i32_0 = arith.constant 0 : i32
    %c0_i32_1 = arith.constant 0 : i32
    return %c0_i32, %c0_i32_0 : i32, i32
  }
  func.func @transform_5(%arg0: i32) -> (i32, i32, i32) {
    %c0_i32 = arith.constant 0 : i32
    %c0_i32_0 = arith.constant 0 : i32
    %c0_i32_1 = arith.constant 0 : i32
    return %arg0, %c0_i32, %c0_i32_0 : i32, i32, i32
  }
}

</mosaic_0001>

<llo_original>
// kernel: se_cat_layer.1
$region0: #{se_cat_layer.1}
  #allocation0 [shape = 'u32[]', space=smem, size = 0x4, offset = 0x4, fixed_abs, tag = 'smem constant byte address 0x4 - core index']
  #allocation1 [shape = 'u32[144,128]{1,0:T(1,128)}', space=vmem, size = 0x12000, scoped, tag = 'internal scratch']
  %s0 = inlined_call_operand.vmem [shape: f32[2,64,64], index: 0, kind: input, shape index: {}, may-alias: {0,5}]
  %s1 = inlined_call_operand.vmem [shape: f32[2,16], index: 1, kind: input, shape index: {}]
  %s2 = inlined_call_operand.vmem [shape: f32[64,128], index: 2, kind: input, shape index: {}]
  %s3 = inlined_call_operand.vmem [shape: f32[16,128], index: 3, kind: input, shape index: {}]
  %s4 = inlined_call_operand.vmem [shape: f32[128,64], index: 4, kind: input, shape index: {}]
  %s5 = inlined_call_operand.vmem [shape: f32[2,64,64], index: 5, kind: output, shape index: {}, may-alias: {0,5}]
  %s6 = sld [smem:[#allocation0]]
  $region30: #{se_cat_layer.1} parent=0
    _
  %s8 = ssub.s32 1, %s6
  %s9 = scalar_select 0, %s8, %s6
  // Predicated region
  $region2: #{se_cat_layer.1} parent=0 // pred_check
    _
  $region3: #{se_cat_layer.1} parent=0 // pred_check_branch
    %11 = sbr.rel (0) target = $region5
  $region4: #{se_cat_layer.1} parent=0 // pred_region
    _
  $region5: #{se_cat_layer.1} parent=0 // pred_fallthru
    _
  // Predicated region
  $region6: #{se_cat_layer.1} parent=0 // pred_check
    _
  $region7: #{se_cat_layer.1} parent=0 // pred_check_branch
    %13 = sbr.rel (0) target = $region9
  $region8: #{se_cat_layer.1} parent=0 // pred_region
    _
  $region9: #{se_cat_layer.1} parent=0 // pred_fallthru
    _
  // Predicated region
  $region10: #{se_cat_layer.1} parent=0 // pred_check
    _
  $region11: #{se_cat_layer.1} parent=0 // pred_check_branch
    %15 = sbr.rel (0) target = $region13
  $region12: #{se_cat_layer.1} parent=0 // pred_region
    _
  $region13: #{se_cat_layer.1} parent=0 // pred_fallthru
    _
  // Predicated region
  $region14: #{se_cat_layer.1} parent=0 // pred_check
    _
  $region15: #{se_cat_layer.1} parent=0 // pred_check_branch
    %17 = sbr.rel (0) target = $region17
  $region16: #{se_cat_layer.1} parent=0 // pred_region
    _
  $region17: #{se_cat_layer.1} parent=0 // pred_fallthru
    _
  // Predicated region
  $region18: #{se_cat_layer.1} parent=0 // pred_check
    _
  $region19: #{se_cat_layer.1} parent=0 // pred_check_branch
    %19 = sbr.rel (0) target = $region21
  $region20: #{se_cat_layer.1} parent=0 // pred_region
    _
  $region21: #{se_cat_layer.1} parent=0 // pred_fallthru
    _
  %v20 = vld [vmem:[%s0] sm:$0xff]
  %v21 = vld [vmem:[%s0 + $0x8] sm:$0xff]
  %v22 = vld [vmem:[%s0 + $0x10] sm:$0xff]
  %v23 = vld [vmem:[%s0 + $0x18] sm:$0xff]
  %v24 = vld [vmem:[%s0 + $0x20] sm:$0xff]
  %v25 = vld [vmem:[%s0 + $0x28] sm:$0xff]
  %v26 = vld [vmem:[%s0 + $0x30] sm:$0xff]
  %v27 = vld [vmem:[%s0 + $0x38] sm:$0xff]
  %v28 = vld [vmem:[%s0 + $0x40] sm:$0xff]
  %v29 = vld [vmem:[%s0 + $0x48] sm:$0xff]
  %v30 = vld [vmem:[%s0 + $0x50] sm:$0xff]
  %v31 = vld [vmem:[%s0 + $0x58] sm:$0xff]
  %v32 = vld [vmem:[%s0 + $0x60] sm:$0xff]
  %v33 = vld [vmem:[%s0 + $0x68] sm:$0xff]
  %v34 = vld [vmem:[%s0 + $0x70] sm:$0xff]
  %v35 = vld [vmem:[%s0 + $0x78] sm:$0xff]
  %vm36 = vcmask 523264
  %v37 = vsel %vm36, %v20, 0.0
  %38 = vadd.xlane.f32.xlu0 %v37
  %v39 = vpop.xlane.xlu0 %38
  %v40 = vsel %vm36, %v21, 0.0
  %41 = vadd.xlane.f32.xlu0 %v40
  %v42 = vpop.xlane.xlu0 %41
  %v43 = vsel %vm36, %v22, 0.0
  %44 = vadd.xlane.f32.xlu0 %v43
  %v45 = vpop.xlane.xlu0 %44
  %v46 = vsel %vm36, %v23, 0.0
  %47 = vadd.xlane.f32.xlu0 %v46
  %v48 = vpop.xlane.xlu0 %47
  %v49 = vsel %vm36, %v24, 0.0
  %50 = vadd.xlane.f32.xlu0 %v49
  %v51 = vpop.xlane.xlu0 %50
  %v52 = vsel %vm36, %v25, 0.0
  %53 = vadd.xlane.f32.xlu0 %v52
  %v54 = vpop.xlane.xlu0 %53
  %v55 = vsel %vm36, %v26, 0.0
  %56 = vadd.xlane.f32.xlu0 %v55
  %v57 = vpop.xlane.xlu0 %56
  %v58 = vsel %vm36, %v27, 0.0
  %59 = vadd.xlane.f32.xlu0 %v58
  %v60 = vpop.xlane.xlu0 %59
  %v61 = vsel %vm36, %v28, 0.0
  %62 = vadd.xlane.f32.xlu0 %v61
  %v63 = vpop.xlane.xlu0 %62
  %v64 = vsel %vm36, %v29, 0.0
  %65 = vadd.xlane.f32.xlu0 %v64
  %v66 = vpop.xlane.xlu0 %65
  %v67 = vsel %vm36, %v30, 0.0
  %68 = vadd.xlane.f32.xlu0 %v67
  %v69 = vpop.xlane.xlu0 %68
  %v70 = vsel %vm36, %v31, 0.0
  %71 = vadd.xlane.f32.xlu0 %v70
  %v72 = vpop.xlane.xlu0 %71
  %v73 = vsel %vm36, %v32, 0.0
  %74 = vadd.xlane.f32.xlu0 %v73
  %v75 = vpop.xlane.xlu0 %74
  %v76 = vsel %vm36, %v33, 0.0
  %77 = vadd.xlane.f32.xlu0 %v76
  %v78 = vpop.xlane.xlu0 %77
  %v79 = vsel %vm36, %v34, 0.0
  %80 = vadd.xlane.f32.xlu0 %v79
  %v81 = vpop.xlane.xlu0 %80
  %v82 = vsel %vm36, %v35, 0.0
  %83 = vadd.xlane.f32.xlu0 %v82
  %v84 = vpop.xlane.xlu0 %83
  %v85 = vmul.f32 %v39, 0.015625
  %v86 = vmul.f32 %v42, 0.015625
  %v87 = vmul.f32 %v45, 0.015625
  %v88 = vmul.f32 %v48, 0.015625
  %v89 = vmul.f32 %v51, 0.015625
  %v90 = vmul.f32 %v54, 0.015625
  %v91 = vmul.f32 %v57, 0.015625
  %v92 = vmul.f32 %v60, 0.015625
  %v93 = vmul.f32 %v63, 0.015625
  %v94 = vmul.f32 %v66, 0.015625
  %v95 = vmul.f32 %v69, 0.015625
  %v96 = vmul.f32 %v72, 0.015625
  %v97 = vmul.f32 %v75, 0.015625
  %v98 = vmul.f32 %v78, 0.015625
  %v99 = vmul.f32 %v81, 0.015625
  %v100 = vmul.f32 %v84, 0.015625
  %s101 = smul.u32 0, 2
  %s102 = scalar_lea.vmem %s1, %s101
  %v103 = vld [vmem:[%s102] sm:$0x3]
  %v104 = vld [vmem:[%s2] sm:$0xff]
  %v105 = vld [vmem:[%s2 + $0x8] sm:$0xff]
  %v106 = vld [vmem:[%s2 + $0x10] sm:$0xff]
  %v107 = vld [vmem:[%s2 + $0x18] sm:$0xff]
  %v108 = vld [vmem:[%s2 + $0x20] sm:$0xff]
  %v109 = vld [vmem:[%s2 + $0x28] sm:$0xff]
  %v110 = vld [vmem:[%s2 + $0x30] sm:$0xff]
  %v111 = vld [vmem:[%s2 + $0x38] sm:$0xff]
  %v112 = vld [vmem:[%s3] sm:$0xff]
  %v113 = vld [vmem:[%s3 + $0x8] sm:$0xff]
  %vm114 = vcmask 130048
  %v116 = vsel %vm114, %v103, 0
  %118 = vmatprep.subr.mxu0 0.0
  %119 = vmatpush1.msra.mxu0 0.0
  %120 = vmatprep.subr.mxu0 0.0
  %121 = vmatpush1.msra.mxu0 0.0
  %122 = vmatprep.subr.mxu0 0.0
  %123 = vmatpush1.msra.mxu0 0.0
  %124 = vmatprep.subr.mxu0 0.0
  %125 = vmatpush1.msra.mxu0 0.0
  %126 = vmatprep.subr.mxu0 0.0
  %127 = vmatpush1.msra.mxu0 0.0
  %128 = vmatprep.subr.mxu0 0.0
  %129 = vmatpush1.msra.mxu0 0.0
  %130 = vmatprep.subr.mxu0 0.0
  %131 = vmatpush1.msra.mxu0 0.0
  %132 = vmatprep.subr.mxu0 0.0
  %133 = vmatpush1.msra.mxu0 0.0
  %134 = vmatprep.subr.mxu0 0.0
  %135 = vmatpush1.msra.mxu0 0.0
  %136 = vmatprep.subr.mxu0 0.0
  %137 = vmatpush1.msra.mxu0 0.0
  %138 = vmatprep.subr.mxu0 0.0
  %139 = vmatpush1.msra.mxu0 0.0
  %140 = vmatprep.subr.mxu0 0.0
  %141 = vmatpush1.msra.mxu0 0.0
  %142 = vmatprep.subr.mxu0 0.0
  %143 = vmatpush1.msra.mxu0 0.0
  %144 = vmatprep.subr.mxu0 0.0
  %145 = vmatpush1.msra.mxu0 0.0
  %146 = vmatprep.subr.mxu0 0.0
  %147 = vmatpush1.msra.mxu0 %v113
  %148 = vmatprep.subr.mxu0 0.0
  %149 = vmatpush1.msra.mxu0 %v112
  %150 = vmatprep.subr.mxu0 0.0
  %151 = vmatpush2.msra.mxu0 0.0
  %152 = vmatprep.subr.mxu0 0.0
  %153 = vmatpush2.msra.mxu0 0.0
  %154 = vmatprep.subr.mxu0 0.0
  %155 = vmatpush2.msra.mxu0 0.0
  %156 = vmatprep.subr.mxu0 0.0
  %157 = vmatpush2.msra.mxu0 0.0
  %158 = vmatprep.subr.mxu0 0.0
  %159 = vmatpush2.msra.mxu0 0.0
  %160 = vmatprep.subr.mxu0 0.0
  %161 = vmatpush2.msra.mxu0 0.0
  %162 = vmatprep.subr.mxu0 0.0
  %163 = vmatpush2.msra.mxu0 0.0
  %164 = vmatprep.subr.mxu0 0.0
  %165 = vmatpush2.msra.mxu0 0.0
  %166 = vmatprep.subr.mxu0 0.0
  %167 = vmatpush2.msra.mxu0 0.0
  %168 = vmatprep.subr.mxu0 0.0
  %169 = vmatpush2.msra.mxu0 0.0
  %170 = vmatprep.subr.mxu0 0.0
  %171 = vmatpush2.msra.mxu0 0.0
  %172 = vmatprep.subr.mxu0 0.0
  %173 = vmatpush2.msra.mxu0 0.0
  %174 = vmatprep.subr.mxu0 0.0
  %175 = vmatpush2.msra.mxu0 0.0
  %176 = vmatprep.subr.mxu0 0.0
  %177 = vmatpush2.msra.mxu0 0.0
  %178 = vmatprep.subr.mxu0 0.0
  %179 = vmatpush2.msra.mxu0 0.0
  %180 = vmatprep.subr.mxu0 0.0
  %181 = vmatpush2.msra.mxu0 0.0
  %182 = vmatprep.mubr.f32.mxu0 0.0
  %183 = vmatmul.mubr.f32.gmra.mxu0 %v116
  %v184 = vpop.f32.mrf.mxu0
  %v185 = vadd.f32 0.0, %v184
  %v186 = vpop.f32.mrf.mxu0
  %187 = vdwg.mxu0
  %v204 = vlaneseq
  %v205 = vand.u32 %v204, 127
  %v206 = vlaneseq
  %v207 = vshrl.u32 %v206, 7
  %v208 = vsub.s32 %v205, %v207
  %v209 = vrot.slane %v85, %v208
  %v210 = vadd.s32 %v205, 4294967288
  %v211 = vlaneseq
  %v212 = vshrl.u32 %v211, 7
  %v213 = vsub.s32 %v210, %v212
  %v214 = vrot.slane %v86, %v213
  %vm215 = vcmask 130112
  %v216 = vsel %vm215, %v214, %v209
  %v217 = vadd.s32 %v205, 4294967280
  %v218 = vlaneseq
  %v219 = vshrl.u32 %v218, 7
  %v220 = vsub.s32 %v217, %v219
  %v221 = vrot.slane %v87, %v220
  %vm222 = vcmask 195712
  %v223 = vsel %vm222, %v221, %v216
  %v224 = vadd.s32 %v205, 4294967272
  %v225 = vlaneseq
  %v226 = vshrl.u32 %v225, 7
  %v227 = vsub.s32 %v224, %v226
  %v228 = vrot.slane %v88, %v227
  %vm229 = vcmask 261312
  %v230 = vsel %vm229, %v228, %v223
  %v231 = vadd.s32 %v205, 4294967264
  %v232 = vlaneseq
  %v233 = vshrl.u32 %v232, 7
  %v234 = vsub.s32 %v231, %v233
  %v235 = vrot.slane %v89, %v234
  %vm236 = vcmask 326912
  %v237 = vsel %vm236, %v235, %v230
  %v238 = vadd.s32 %v205, 4294967256
  %v239 = vlaneseq
  %v240 = vshrl.u32 %v239, 7
  %v241 = vsub.s32 %v238, %v240
  %v242 = vrot.slane %v90, %v241
  %vm243 = vcmask 392512
  %v244 = vsel %vm243, %v242, %v237
  %v245 = vadd.s32 %v205, 4294967248
  %v246 = vlaneseq
  %v247 = vshrl.u32 %v246, 7
  %v248 = vsub.s32 %v245, %v247
  %v249 = vrot.slane %v91, %v248
  %vm250 = vcmask 458112
  %v251 = vsel %vm250, %v249, %v244
  %v252 = vadd.s32 %v205, 4294967240
  %v253 = vlaneseq
  %v254 = vshrl.u32 %v253, 7
  %v255 = vsub.s32 %v252, %v254
  %v256 = vrot.slane %v92, %v255
  %vm257 = vcmask 523712
  %v258 = vsel %vm257, %v256, %v251
  %v259 = vlaneseq
  %v260 = vshrl.u32 %v259, 7
  %v261 = vsub.s32 %v205, %v260
  %v262 = vrot.slane %v93, %v261
  %v263 = vlaneseq
  %v264 = vshrl.u32 %v263, 7
  %v265 = vsub.s32 %v210, %v264
  %v266 = vrot.slane %v94, %v265
  %v267 = vsel %vm215, %v266, %v262
  %v268 = vlaneseq
  %v269 = vshrl.u32 %v268, 7
  %v270 = vsub.s32 %v217, %v269
  %v271 = vrot.slane %v95, %v270
  %v272 = vsel %vm222, %v271, %v267
  %v273 = vlaneseq
  %v274 = vshrl.u32 %v273, 7
  %v275 = vsub.s32 %v224, %v274
  %v276 = vrot.slane %v96, %v275
  %v277 = vsel %vm229, %v276, %v272
  %v278 = vlaneseq
  %v279 = vshrl.u32 %v278, 7
  %v280 = vsub.s32 %v231, %v279
  %v281 = vrot.slane %v97, %v280
  %v282 = vsel %vm236, %v281, %v277
  %v283 = vlaneseq
  %v284 = vshrl.u32 %v283, 7
  %v285 = vsub.s32 %v238, %v284
  %v286 = vrot.slane %v98, %v285
  %v287 = vsel %vm243, %v286, %v282
  %v288 = vlaneseq
  %v289 = vshrl.u32 %v288, 7
  %v290 = vsub.s32 %v245, %v289
  %v291 = vrot.slane %v99, %v290
  %v292 = vsel %vm250, %v291, %v287
  %v293 = vlaneseq
  %v294 = vshrl.u32 %v293, 7
  %v295 = vsub.s32 %v252, %v294
  %v296 = vrot.slane %v100, %v295
  %v297 = vsel %vm257, %v296, %v292
  %vm298 = vcmask 1041409
  %v299 = vsel %vm298, %v297, %v258
  %v300 = vsel %vm36, %v299, 0
  %302 = vmatprep.subr.mxu0 0.0
  %303 = vmatpush1.msra.mxu0 0.0
  %304 = vmatprep.subr.mxu0 0.0
  %305 = vmatpush1.msra.mxu0 0.0
  %306 = vmatprep.subr.mxu0 0.0
  %307 = vmatpush1.msra.mxu0 0.0
  %308 = vmatprep.subr.mxu0 0.0
  %309 = vmatpush1.msra.mxu0 0.0
  %310 = vmatprep.subr.mxu0 0.0
  %311 = vmatpush1.msra.mxu0 0.0
  %312 = vmatprep.subr.mxu0 0.0
  %313 = vmatpush1.msra.mxu0 0.0
  %314 = vmatprep.subr.mxu0 0.0
  %315 = vmatpush1.msra.mxu0 0.0
  %316 = vmatprep.subr.mxu0 0.0
  %317 = vmatpush1.msra.mxu0 0.0
  %318 = vmatprep.subr.mxu0 0.0
  %319 = vmatpush1.msra.mxu0 %v111
  %320 = vmatprep.subr.mxu0 0.0
  %321 = vmatpush1.msra.mxu0 %v110
  %322 = vmatprep.subr.mxu0 0.0
  %323 = vmatpush1.msra.mxu0 %v109
  %324 = vmatprep.subr.mxu0 0.0
  %325 = vmatpush1.msra.mxu0 %v108
  %326 = vmatprep.subr.mxu0 0.0
  %327 = vmatpush1.msra.mxu0 %v107
  %328 = vmatprep.subr.mxu0 0.0
  %329 = vmatpush1.msra.mxu0 %v106
  %330 = vmatprep.subr.mxu0 0.0
  %331 = vmatpush1.msra.mxu0 %v105
  %332 = vmatprep.subr.mxu0 0.0
  %333 = vmatpush1.msra.mxu0 %v104
  %334 = vmatprep.subr.mxu0 0.0
  %335 = vmatpush2.msra.mxu0 0.0
  %336 = vmatprep.subr.mxu0 0.0
  %337 = vmatpush2.msra.mxu0 0.0
  %338 = vmatprep.subr.mxu0 0.0
  %339 = vmatpush2.msra.mxu0 0.0
  %340 = vmatprep.subr.mxu0 0.0
  %341 = vmatpush2.msra.mxu0 0.0
  %342 = vmatprep.subr.mxu0 0.0
  %343 = vmatpush2.msra.mxu0 0.0
  %344 = vmatprep.subr.mxu0 0.0
  %345 = vmatpush2.msra.mxu0 0.0
  %346 = vmatprep.subr.mxu0 0.0
  %347 = vmatpush2.msra.mxu0 0.0
  %348 = vmatprep.subr.mxu0 0.0
  %349 = vmatpush2.msra.mxu0 0.0
  %350 = vmatprep.subr.mxu0 0.0
  %351 = vmatpush2.msra.mxu0 0.0
  %352 = vmatprep.subr.mxu0 0.0
  %353 = vmatpush2.msra.mxu0 0.0
  %354 = vmatprep.subr.mxu0 0.0
  %355 = vmatpush2.msra.mxu0 0.0
  %356 = vmatprep.subr.mxu0 0.0
  %357 = vmatpush2.msra.mxu0 0.0
  %358 = vmatprep.subr.mxu0 0.0
  %359 = vmatpush2.msra.mxu0 0.0
  %360 = vmatprep.subr.mxu0 0.0
  %361 = vmatpush2.msra.mxu0 0.0
  %362 = vmatprep.subr.mxu0 0.0
  %363 = vmatpush2.msra.mxu0 0.0
  %364 = vmatprep.subr.mxu0 0.0
  %365 = vmatpush2.msra.mxu0 0.0
  %366 = vmatprep.mubr.f32.mxu0 0.0
  %367 = vmatmul.mubr.f32.gmra.mxu0 %v300
  %v368 = vpop.f32.mrf.mxu0
  %v369 = vadd.f32 %v185, %v368
  %v370 = vpop.f32.mrf.mxu0
  %371 = vdwg.mxu0
  %v372 = vmax.f32 %v369, 0.0
  %v373 = vld [vmem:[%s4] sm:$0xff]
  %v374 = vld [vmem:[%s4 + $0x8] sm:$0xff]
  %v375 = vld [vmem:[%s4 + $0x10] sm:$0xff]
  %v376 = vld [vmem:[%s4 + $0x18] sm:$0xff]
  %v377 = vld [vmem:[%s4 + $0x20] sm:$0xff]
  %v378 = vld [vmem:[%s4 + $0x28] sm:$0xff]
  %v379 = vld [vmem:[%s4 + $0x30] sm:$0xff]
  %v380 = vld [vmem:[%s4 + $0x38] sm:$0xff]
  %v381 = vld [vmem:[%s4 + $0x40] sm:$0xff]
  %v382 = vld [vmem:[%s4 + $0x48] sm:$0xff]
  %v383 = vld [vmem:[%s4 + $0x50] sm:$0xff]
  %v384 = vld [vmem:[%s4 + $0x58] sm:$0xff]
  %v385 = vld [vmem:[%s4 + $0x60] sm:$0xff]
  %v386 = vld [vmem:[%s4 + $0x68] sm:$0xff]
  %v387 = vld [vmem:[%s4 + $0x70] sm:$0xff]
  %v388 = vld [vmem:[%s4 + $0x78] sm:$0xff]
  %389 = vmatprep.subr.mxu0 0.0
  %390 = vmatpush1.msra.mxu0 %v388
  %391 = vmatprep.subr.mxu0 0.0
  %392 = vmatpush1.msra.mxu0 %v387
  %393 = vmatprep.subr.mxu0 0.0
  %394 = vmatpush1.msra.mxu0 %v386
  %395 = vmatprep.subr.mxu0 0.0
  %396 = vmatpush1.msra.mxu0 %v385
  %397 = vmatprep.subr.mxu0 0.0
  %398 = vmatpush1.msra.mxu0 %v384
  %399 = vmatprep.subr.mxu0 0.0
  %400 = vmatpush1.msra.mxu0 %v383
  %401 = vmatprep.subr.mxu0 0.0
  %402 = vmatpush1.msra.mxu0 %v382
  %403 = vmatprep.subr.mxu0 0.0
  %404 = vmatpush1.msra.mxu0 %v381
  %405 = vmatprep.subr.mxu0 0.0
  %406 = vmatpush1.msra.mxu0 %v380
  %407 = vmatprep.subr.mxu0 0.0
  %408 = vmatpush1.msra.mxu0 %v379
  %409 = vmatprep.subr.mxu0 0.0
  %410 = vmatpush1.msra.mxu0 %v378
  %411 = vmatprep.subr.mxu0 0.0
  %412 = vmatpush1.msra.mxu0 %v377
  %413 = vmatprep.subr.mxu0 0.0
  %414 = vmatpush1.msra.mxu0 %v376
  %415 = vmatprep.subr.mxu0 0.0
  %416 = vmatpush1.msra.mxu0 %v375
  %417 = vmatprep.subr.mxu0 0.0
  %418 = vmatpush1.msra.mxu0 %v374
  %419 = vmatprep.subr.mxu0 0.0
  %420 = vmatpush1.msra.mxu0 %v373
  %421 = vmatprep.subr.mxu0 0.0
  %422 = vmatpush2.msra.mxu0 0.0
  %423 = vmatprep.subr.mxu0 0.0
  %424 = vmatpush2.msra.mxu0 0.0
  %425 = vmatprep.subr.mxu0 0.0
  %426 = vmatpush2.msra.mxu0 0.0
  %427 = vmatprep.subr.mxu0 0.0
  %428 = vmatpush2.msra.mxu0 0.0
  %429 = vmatprep.subr.mxu0 0.0
  %430 = vmatpush2.msra.mxu0 0.0
  %431 = vmatprep.subr.mxu0 0.0
  %432 = vmatpush2.msra.mxu0 0.0
  %433 = vmatprep.subr.mxu0 0.0
  %434 = vmatpush2.msra.mxu0 0.0
  %435 = vmatprep.subr.mxu0 0.0
  %436 = vmatpush2.msra.mxu0 0.0
  %437 = vmatprep.subr.mxu0 0.0
  %438 = vmatpush2.msra.mxu0 0.0
  %439 = vmatprep.subr.mxu0 0.0
  %440 = vmatpush2.msra.mxu0 0.0
  %441 = vmatprep.subr.mxu0 0.0
  %442 = vmatpush2.msra.mxu0 0.0
  %443 = vmatprep.subr.mxu0 0.0
  %444 = vmatpush2.msra.mxu0 0.0
  %445 = vmatprep.subr.mxu0 0.0
  %446 = vmatpush2.msra.mxu0 0.0
  %447 = vmatprep.subr.mxu0 0.0
  %448 = vmatpush2.msra.mxu0 0.0
  %449 = vmatprep.subr.mxu0 0.0
  %450 = vmatpush2.msra.mxu0 0.0
  %451 = vmatprep.subr.mxu0 0.0
  %452 = vmatpush2.msra.mxu0 0.0
  %453 = vmatprep.mubr.f32.mxu0 0.0
  %454 = vmatmul.mubr.f32.gmra.mxu0 %v372
  %v455 = vpop.f32.mrf.mxu0
  %v456 = vadd.f32 0.0, %v455
  %v457 = vpop.f32.mrf.mxu0
  %458 = vdwg.mxu0
  %v459 = vxor.u32 %v456, 2147483648
  %v460 = vmul.f32 %v459, 1.442695
  %v461 = vpow.pop %v460
  %v462 = vadd.f32 %v461, 1.0
  %v463 = vrcp.pop %v462
  %v464 = vmul.f32 1.0, %v463
  %v465 = vlaneseq
  %v466 = vshrl.u32 %v465, 7
  %v467 = vsub.s32 0, %v466
  %v468 = vrot.slane %v464, %v467
  %470 = vbcast.lane.b32.xlu0 %v468, 256
  %v471 = vpop.permute.xlu0 %470
  %s473 = sor.u32 256, 8
  %474 = vbcast.lane.b32.xlu0 %v468, %s473
  %v475 = vpop.permute.xlu0 %474
  %s477 = sor.u32 256, 16
  %478 = vbcast.lane.b32.xlu0 %v468, %s477
  %v479 = vpop.permute.xlu0 %478
  %s481 = sor.u32 256, 24
  %482 = vbcast.lane.b32.xlu0 %v468, %s481
  %v483 = vpop.permute.xlu0 %482
  %s485 = sor.u32 256, 32
  %486 = vbcast.lane.b32.xlu0 %v468, %s485
  %v487 = vpop.permute.xlu0 %486
  %s489 = sor.u32 256, 40
  %490 = vbcast.lane.b32.xlu0 %v468, %s489
  %v491 = vpop.permute.xlu0 %490
  %s493 = sor.u32 256, 48
  %494 = vbcast.lane.b32.xlu0 %v468, %s493
  %v495 = vpop.permute.xlu0 %494
  %s497 = sor.u32 256, 56
  %498 = vbcast.lane.b32.xlu0 %v468, %s497
  %v499 = vpop.permute.xlu0 %498
  %v500 = vlaneseq
  %v501 = vshrl.u32 %v500, 7
  %v502 = vsub.s32 1, %v501
  %v503 = vrot.slane %v464, %v502
  %505 = vbcast.lane.b32.xlu0 %v503, 256
  %v506 = vpop.permute.xlu0 %505
  %s508 = sor.u32 256, 8
  %509 = vbcast.lane.b32.xlu0 %v503, %s508
  %v510 = vpop.permute.xlu0 %509
  %s512 = sor.u32 256, 16
  %513 = vbcast.lane.b32.xlu0 %v503, %s512
  %v514 = vpop.permute.xlu0 %513
  %s516 = sor.u32 256, 24
  %517 = vbcast.lane.b32.xlu0 %v503, %s516
  %v518 = vpop.permute.xlu0 %517
  %s520 = sor.u32 256, 32
  %521 = vbcast.lane.b32.xlu0 %v503, %s520
  %v522 = vpop.permute.xlu0 %521
  %s524 = sor.u32 256, 40
  %525 = vbcast.lane.b32.xlu0 %v503, %s524
  %v526 = vpop.permute.xlu0 %525
  %s528 = sor.u32 256, 48
  %529 = vbcast.lane.b32.xlu0 %v503, %s528
  %v530 = vpop.permute.xlu0 %529
  %s532 = sor.u32 256, 56
  %533 = vbcast.lane.b32.xlu0 %v503, %s532
  %v534 = vpop.permute.xlu0 %533
  %v535 = vmul.f32 %v20, %v471
  %v536 = vmul.f32 %v21, %v475
  %v537 = vmul.f32 %v22, %v479
  %v538 = vmul.f32 %v23, %v483
  %v539 = vmul.f32 %v24, %v487
  %v540 = vmul.f32 %v25, %v491
  %v541 = vmul.f32 %v26, %v495
  %v542 = vmul.f32 %v27, %v499
  %v543 = vmul.f32 %v28, %v506
  %v544 = vmul.f32 %v29, %v510
  %v545 = vmul.f32 %v30, %v514
  %v546 = vmul.f32 %v31, %v518
  %v547 = vmul.f32 %v32, %v522
  %v548 = vmul.f32 %v33, %v526
  %v549 = vmul.f32 %v34, %v530
  %v550 = vmul.f32 %v35, %v534
  %551 = vst.msk [vmem:[%s5] sm:$0xff] %vm36, %v535
  %552 = vst.msk [vmem:[%s5 + $0x8] sm:$0xff] %vm36, %v536
  %553 = vst.msk [vmem:[%s5 + $0x10] sm:$0xff] %vm36, %v537
  %554 = vst.msk [vmem:[%s5 + $0x18] sm:$0xff] %vm36, %v538
  %555 = vst.msk [vmem:[%s5 + $0x20] sm:$0xff] %vm36, %v539
  %556 = vst.msk [vmem:[%s5 + $0x28] sm:$0xff] %vm36, %v540
  %557 = vst.msk [vmem:[%s5 + $0x30] sm:$0xff] %vm36, %v541
  %558 = vst.msk [vmem:[%s5 + $0x38] sm:$0xff] %vm36, %v542
  %559 = vst.msk [vmem:[%s5 + $0x40] sm:$0xff] %vm36, %v543
  %560 = vst.msk [vmem:[%s5 + $0x48] sm:$0xff] %vm36, %v544
  %561 = vst.msk [vmem:[%s5 + $0x50] sm:$0xff] %vm36, %v545
  %562 = vst.msk [vmem:[%s5 + $0x58] sm:$0xff] %vm36, %v546
  %563 = vst.msk [vmem:[%s5 + $0x60] sm:$0xff] %vm36, %v547
  %564 = vst.msk [vmem:[%s5 + $0x68] sm:$0xff] %vm36, %v548
  %565 = vst.msk [vmem:[%s5 + $0x70] sm:$0xff] %vm36, %v549
  %566 = vst.msk [vmem:[%s5 + $0x78] sm:$0xff] %vm36, %v550
  // Predicated region
  $region22: #{se_cat_layer.1} parent=0 // pred_check
    _
  $region23: #{se_cat_layer.1} parent=0 // pred_check_branch
    %568 = sbr.rel (0) target = $region25
  $region24: #{se_cat_layer.1} parent=0 // pred_region
    _
  $region25: #{se_cat_layer.1} parent=0 // pred_fallthru
    _
  // Predicated region
  $region26: #{se_cat_layer.1} parent=0 // pred_check
    _
  $region27: #{se_cat_layer.1} parent=0 // pred_check_branch
    %570 = sbr.rel (0) target = $region29
  $region28: #{se_cat_layer.1} parent=0 // pred_region
    _
  $region29: #{se_cat_layer.1} parent=0 // pred_fallthru
    _

</llo_original>
